<compile_context>
chip_gen: v5e
topology: v5e:2x2
jax: 0.10.0
libtpu: 0.0.40
codegen_flags: <defaults>
</compile_context>

<pallas_src>
import jax
import jax.numpy as jnp
from jax import lax
from jax.experimental import pallas as pl
from jax.experimental.pallas import tpu as pltpu


def _mp_kernel(len_ref, x_ref, w_ref, b_ref, out_ref, pooled_ref):
    """Grid = (batch blocks, output-column blocks, sequence chunks).

    len_ref    : VMEM (TB, 1) int32   -- valid lengths for this batch block
    x_ref      : VMEM (TB, TL, H)     -- sequence chunk for this batch block
    w_ref      : VMEM (H, TO)         -- weight tile (already transposed)
    b_ref      : VMEM (1, TO) f32     -- bias tile
    out_ref    : VMEM (TB, TO)        -- pooled + projected output tile
    pooled_ref : VMEM (TB, H) f32     -- scratch: running masked sum of x
    """
    l = pl.program_id(2)
    nl = pl.num_programs(2)

    # Fresh (b, o) pair: zero the pooling accumulator.
    @pl.when(l == 0)
    def _():
        pooled_ref[...] = jnp.zeros_like(pooled_ref)

    # Masked partial sum over this sequence chunk, accumulated in f32.
    x = x_ref[...]                                            # (TB, TL, H)
    tb, tl, _ = x.shape
    lengths = len_ref[...]                                    # (TB, 1) int32
    t_idx = l * tl + lax.broadcasted_iota(jnp.int32, (1, tl, 1), 1)
    mask = t_idx < lengths.reshape(tb, 1, 1)                  # (TB, TL, 1)
    pooled_ref[...] += jnp.sum(jnp.where(mask, x, 0), axis=1, dtype=jnp.float32)

    # Last chunk: scale by 1/len (raw length -> NaN for len==0, as in PyTorch),
    # then a single (TB, H) @ (H, TO) MXU matmul with f32 accumulation.
    @pl.when(l == nl - 1)
    def _():
        pooled = pooled_ref[...] / lengths.astype(jnp.float32)      # (TB, H)
        out = jnp.dot(pooled, w_ref[...].astype(jnp.float32),
                      preferred_element_type=jnp.float32)
        out_ref[...] = (out + b_ref[...]).astype(out_ref.dtype)


def _round_up(n, m):
    return ((n + m - 1) // m) * m


_VMEM_CAP = None


def _vmem_capacity_bytes():
    """Per-core VMEM capacity; conservative 64 MiB (v7x) fallback."""
    global _VMEM_CAP
    if _VMEM_CAP is None:
        cap = 64 << 20
        try:
            info = pltpu.get_tpu_info()
            c = getattr(info, "vmem_capacity_bytes", None)
            if c:
                cap = int(c)
        except Exception:
            pass
        _VMEM_CAP = cap
    return _VMEM_CAP


def _select_tiles(B, L, H, O, budget):
    """Budget-driven tile selection (all static Python ints)."""
    dt = 4  # f32 bytes
    Bp0 = _round_up(B, 8)
    Op0 = _round_up(O, 128)

    # Output-column tile: keep the full weight resident whenever its
    # double-buffered footprint fits in ~1/3 of the budget (-> DMA'd once).
    if 2 * H * Op0 * dt <= budget // 3:
        to = Op0
    else:
        to = max(128, ((budget // 3) // (2 * H * dt)) // 128 * 128)
        to = min(to, Op0)
    Op = _round_up(Op0, to)

    # Batch tile: sublane-dense, and >= 2 batch blocks when possible so the
    # "parallel" batch axis can be sharded across both v7x TensorCores.
    tb = min(Bp0, 512)
    if Bp0 >= 16:
        tb = min(tb, _round_up((Bp0 + 1) // 2, 8))

    def fits(tb_, tl_):
        need = (2 * tb_ * tl_ * H        # x chunk (double-buffered)
                + 2 * H * to             # weight tile
                + 2 * tb_ * to           # output tile
                + tb_ * H                # pooled scratch (f32)
                + 2 * to + 2 * tb_)      # bias + lengths
        return need * dt <= budget

    while tb > 8 and not fits(tb, 8):
        tb -= 8

    # Sequence-chunk tile: as large as the remaining budget allows (<= 512).
    tl = min(_round_up(L, 8), 512)
    while tl > 8 and not fits(tb, tl):
        tl -= 8
    if tl >= L:
        tl, Lp = L, L                    # single chunk; full-dim block is legal
    else:
        Lp = _round_up(L, tl)

    Bp = _round_up(B, tb)
    return tb, tl, to, Bp, Lp, Op


@jax.jit
def mp_forward(x, lengths, w_t, bias):
    """Mean-pooling module forward.

    x       : (B, L, H) float32
    lengths : (B,) int32
    w_t     : (H, O) float32   -- nn.Linear weight, pre-transposed ONCE outside jit
    bias    : (O,)  float32
    returns : (B, O) float32   (the PyTorch module returns (output, None))
    """
    B, L, H = x.shape
    O = w_t.shape[1]

    cap = _vmem_capacity_bytes()
    budget = cap - max(cap // 8, 8 << 20)          # ~56 MiB on v7x, ~112 MiB on v5e/v6e

    tb, tl, to, Bp, Lp, Op = _select_tiles(B, L, H, O, budget)
    nb, no, nl = Bp // tb, Op // to, Lp // tl
    # TODO(synk): when no > 1 (weight too large for VMEM), x is re-streamed once
    # per output-column block; a two-pass pool-then-project scheme would avoid it.

    # ---- pad to tile multiples (padded rows use length=1, sliced off below) ----
    if Bp != B or Lp != L:
        x = jnp.pad(x, ((0, Bp - B), (0, Lp - L), (0, 0)))
    if Bp != B:
        lengths = jnp.pad(lengths, (0, Bp - B), constant_values=1)
    if Op != O:
        w_t = jnp.pad(w_t, ((0, 0), (0, Op - O)))
        bias = jnp.pad(bias, (0, Op - O))

    len2d = lengths.astype(jnp.int32).reshape(Bp, 1)
    bias2d = bias.astype(jnp.float32).reshape(1, Op)

    flops = 2 * Bp * H * Op + Bp * Lp * H * no
    bytes_accessed = 4 * (Bp * Lp * H * no + H * Op + Bp * Op + Bp + Op)

    out = pl.pallas_call(
        _mp_kernel,
        out_shape=jax.ShapeDtypeStruct((Bp, Op), x.dtype),
        grid_spec=pltpu.PrefetchScalarGridSpec(
            num_scalar_prefetch=0,
            grid=(nb, no, nl),
            in_specs=[
                pl.BlockSpec((tb, 1), lambda b, o, l: (b, 0)),        # lengths
                pl.BlockSpec((tb, tl, H), lambda b, o, l: (b, l, 0)),  # x chunk
                pl.BlockSpec((H, to), lambda b, o, l: (0, o)),        # weight tile
                pl.BlockSpec((1, to), lambda b, o, l: (0, o)),        # bias tile
            ],
            out_specs=pl.BlockSpec((tb, to), lambda b, o, l: (b, o)),
            scratch_shapes=[pltpu.VMEM((tb, H), jnp.float32)],
        ),
        compiler_params=pltpu.CompilerParams(
            dimension_semantics=("parallel", "parallel", "arbitrary"),
            vmem_limit_bytes=int(budget),
        ),
        cost_estimate=pl.CostEstimate(
            flops=flops, transcendentals=0, bytes_accessed=bytes_accessed),
    )(len2d, x, w_t, bias2d)

    return out[:B, :O]


def mp_reference(x, lengths, weight, bias):
    """Pure-JAX reference matching the PyTorch semantics."""
    hidden = jnp.einsum("blh,oh->blo", x, weight) + bias          # (B, L, O)
    L = x.shape[1]
    t_idx = jnp.arange(L)[None, :, None]                          # (1, L, 1)
    mask = (t_idx < lengths[:, None, None]).astype(x.dtype)
    summed = jnp.sum(hidden * mask, axis=1)                       # (B, O)
    return summed / lengths[:, None].astype(x.dtype)


if __name__ == "__main__":
    key = jax.random.PRNGKey(0)
    k_x, k_w, k_b = jax.random.split(key, 3)

    B, L, H, O = 2, 8, 32, 16
    x = jax.random.normal(k_x, (B, L, H), dtype=jnp.float32)
    lengths = jnp.array([5, 8], dtype=jnp.int32)

    # PyTorch nn.Linear shapes: weight (O, H), bias (O,)
    bound = 1.0 / (H ** 0.5)
    weight = jax.random.uniform(k_w, (O, H), minval=-bound, maxval=bound, dtype=jnp.float32)
    bias = jax.random.uniform(k_b, (O,), minval=-bound, maxval=bound, dtype=jnp.float32)

    # Transpose once, outside the jitted forward (no per-call weight.T round-trip).
    w_t = jnp.asarray(weight.T)                                   # (H, O)

    out = mp_forward(x, lengths, w_t, bias)
    jax.block_until_ready(out)

    ref = mp_reference(x, lengths, weight, bias)
    assert out.shape == (B, O)
    assert jnp.allclose(out, ref, atol=1e-5, rtol=1e-4), "mismatch vs reference"

    # The module returns (output, None); second element carried at the Python level.
    result = (out, None)
    print("KERNEL_OK")
</pallas_src>

<mosaic_0001>
module attributes {stable_mosaic.version = 11 : i64} {
  func.func @_mp_kernel(%arg0: i32, %arg1: i32, %arg2: i32, %arg3: memref<8x1xi32, #tpu.memory_space<vmem>>, %arg4: memref<8x8x32xf32, #tpu.memory_space<vmem>>, %arg5: memref<32x128xf32, #tpu.memory_space<vmem>>, %arg6: memref<1x128xf32, #tpu.memory_space<vmem>>, %arg7: memref<8x128xf32, #tpu.memory_space<vmem>>, %arg8: memref<8x32xf32, #tpu.memory_space<vmem>>) attributes {dimension_semantics = [#tpu.dimension_semantics<parallel>, #tpu.dimension_semantics<parallel>, #tpu.dimension_semantics<arbitrary>], iteration_bounds = array<i64: 1, 1, 1>, scalar_prefetch = 0 : i64, scratch_operands = 1 : i64, tpu.core_type = #tpu.core_type<tc>, window_params = [{transform_indices = @transform_0, window_bounds = array<i64: 8, 1>}, {transform_indices = @transform_1, window_bounds = array<i64: 8, 8, 32>}, {transform_indices = @transform_2, window_bounds = array<i64: 32, 128>}, {transform_indices = @transform_3, window_bounds = array<i64: 1, 128>}, {transform_indices = @transform_4, window_bounds = array<i64: 8, 128>}]} {
    %c0_i32 = arith.constant 0 : i32
    %0 = arith.cmpi eq, %arg2, %c0_i32 : i32
    %1 = arith.extui %0 : i1 to i32
    %c0_i32_0 = arith.constant 0 : i32
    %2 = arith.cmpi ne, %1, %c0_i32_0 : i32
    scf.if %2 {
      %cst_12 = arith.constant 0.000000e+00 : f32
      %25 = vector.broadcast %cst_12 : f32 to vector<8x32xf32>
      %c0_13 = arith.constant 0 : index
      %c0_14 = arith.constant 0 : index
      %26 = vector.load %arg8[%c0_13, %c0_14] : memref<8x32xf32, #tpu.memory_space<vmem>>, vector<8x32xf32>
      tpu.vector_store %arg8[%c0_13, %c0_14], %25 {strides = array<i32>} : memref<8x32xf32, #tpu.memory_space<vmem>>, vector<8x32xf32>,
    } else {
    }
    %c0 = arith.constant 0 : index
    %c0_1 = arith.constant 0 : index
    %c0_2 = arith.constant 0 : index
    %3 = vector.load %arg4[%c0, %c0_1, %c0_2] : memref<8x8x32xf32, #tpu.memory_space<vmem>>, vector<8x8x32xf32>
    %c0_3 = arith.constant 0 : index
    %c0_4 = arith.constant 0 : index
    %4 = vector.load %arg3[%c0_3, %c0_4] : memref<8x1xi32, #tpu.memory_space<vmem>>, vector<8x1xi32>
    %c8_i32 = arith.constant 8 : i32
    %5 = arith.muli %arg2, %c8_i32 : i32
    %6 = tpu.iota {dimensions = array<i32: 1>} : vector<1x8x1xi32>
    %7 = vector.broadcast %5 : i32 to vector<1x8x1xi32>
    %8 = arith.addi %7, %6 : vector<1x8x1xi32>
    %9 = vector.shape_cast %4 : vector<8x1xi32> to vector<8x1x1xi32>
    %10 = vector.broadcast %8 : vector<1x8x1xi32> to vector<8x8x1xi32>
    %11 = vector.broadcast %9 : vector<8x1x1xi32> to vector<8x8x1xi32>
    %12 = arith.cmpi slt, %10, %11 : vector<8x8x1xi32>
    %c0_5 = arith.constant 0 : index
    %c0_6 = arith.constant 0 : index
    %13 = vector.load %arg8[%c0_5, %c0_6] : memref<8x32xf32, #tpu.memory_space<vmem>>, vector<8x32xf32>
    %c0_i32_7 = arith.constant 0 : i32
    %14 = arith.sitofp %c0_i32_7 : i32 to f32
    %15 = vector.shape_cast %12 : vector<8x8x1xi1> to vector<8x8x1xi1>
    %16 = vector.broadcast %15 : vector<8x8x1xi1> to vector<8x8x32xi1>
    %17 = vector.broadcast %14 : f32 to vector<8x8x32xf32>
    %18 = arith.select %16, %3, %17 : vector<8x8x32xi1>, vector<8x8x32xf32>
    %cst = arith.constant dense<0.000000e+00> : vector<8x32xf32>
    %19 = vector.multi_reduction <add>, %18, %cst [1] : vector<8x8x32xf32> to vector<8x32xf32>
    %20 = arith.addf %13, %19 : vector<8x32xf32>
    %c0_8 = arith.constant 0 : index
    %c0_9 = arith.constant 0 : index
    %21 = vector.load %arg8[%c0_8, %c0_9] : memref<8x32xf32, #tpu.memory_space<vmem>>, vector<8x32xf32>
    tpu.vector_store %arg8[%c0_8, %c0_9], %20 {strides = array<i32>} : memref<8x32xf32, #tpu.memory_space<vmem>>, vector<8x32xf32>,
    %c0_i32_10 = arith.constant 0 : i32
    %22 = arith.cmpi eq, %arg2, %c0_i32_10 : i32
    %23 = arith.extui %22 : i1 to i32
    %c0_i32_11 = arith.constant 0 : i32
    %24 = arith.cmpi ne, %23, %c0_i32_11 : i32
    scf.if %24 {
      %c0_12 = arith.constant 0 : index
      %c0_13 = arith.constant 0 : index
      %25 = vector.load %arg8[%c0_12, %c0_13] : memref<8x32xf32, #tpu.memory_space<vmem>>, vector<8x32xf32>
      %26 = arith.sitofp %4 : vector<8x1xi32> to vector<8x1xf32>
      %27 = vector.broadcast %26 : vector<8x1xf32> to vector<8x32xf32>
      %28 = arith.divf %25, %27 : vector<8x32xf32>
      %c0_14 = arith.constant 0 : index
      %c0_15 = arith.constant 0 : index
      %29 = vector.load %arg5[%c0_14, %c0_15] : memref<32x128xf32, #tpu.memory_space<vmem>>, vector<32x128xf32>
      %cst_16 = arith.constant dense<0.000000e+00> : vector<8x128xf32>
      %30 = tpu.matmul %28, %29, %cst_16 {dimension_numbers = #tpu.dot_dimension_numbers<[1], [0], [0], [1], [0, 0, 1, 1], [], []>} : vector<8x32xf32>, vector<32x128xf32>, vector<8x128xf32> -> vector<8x128xf32>
      %c0_17 = arith.constant 0 : index
      %c0_18 = arith.constant 0 : index
      %31 = vector.load %arg6[%c0_17, %c0_18] : memref<1x128xf32, #tpu.memory_space<vmem>>, vector<1x128xf32>
      %32 = vector.broadcast %31 : vector<1x128xf32> to vector<8x128xf32>
      %33 = arith.addf %30, %32 : vector<8x128xf32>
      %c0_19 = arith.constant 0 : index
      %c0_20 = arith.constant 0 : index
      %34 = vector.load %arg7[%c0_19, %c0_20] : memref<8x128xf32, #tpu.memory_space<vmem>>, vector<8x128xf32>
      tpu.vector_store %arg7[%c0_19, %c0_20], %33 {strides = array<i32>} : memref<8x128xf32, #tpu.memory_space<vmem>>, vector<8x128xf32>,
    } else {
    }
    return
  }
  func.func @transform_0(%arg0: i32, %arg1: i32, %arg2: i32) -> (i32, i32) {
    %c0_i32 = arith.constant 0 : i32
    %c0_i32_0 = arith.constant 0 : i32
    return %arg0, %c0_i32 : i32, i32
  }
  func.func @transform_1(%arg0: i32, %arg1: i32, %arg2: i32) -> (i32, i32, i32) {
    %c0_i32 = arith.constant 0 : i32
    %c0_i32_0 = arith.constant 0 : i32
    return %arg0, %arg2, %c0_i32 : i32, i32, i32
  }
  func.func @transform_2(%arg0: i32, %arg1: i32, %arg2: i32) -> (i32, i32) {
    %c0_i32 = arith.constant 0 : i32
    %c0_i32_0 = arith.constant 0 : i32
    return %c0_i32, %arg1 : i32, i32
  }
  func.func @transform_3(%arg0: i32, %arg1: i32, %arg2: i32) -> (i32, i32) {
    %c0_i32 = arith.constant 0 : i32
    %c0_i32_0 = arith.constant 0 : i32
    return %c0_i32, %arg1 : i32, i32
  }
  func.func @transform_4(%arg0: i32, %arg1: i32, %arg2: i32) -> (i32, i32) {
    %c0_i32 = arith.constant 0 : i32
    return %arg0, %arg1 : i32, i32
  }
}

</mosaic_0001>

<llo_original>
// kernel: mp_forward.1
$region0: #{mp_forward.1}
  #allocation0 [shape = 'u32[]', space=smem, size = 0x4, offset = 0x4, fixed_abs, tag = 'smem constant byte address 0x4 - core index']
  #allocation1 [shape = 'u32[72,128]{1,0:T(1,128)}', space=vmem, size = 0x9000, scoped, tag = 'internal scratch']
  #allocation2 [shape = 'f32[8,32]{1,0:T(8,128)}', space=vmem, size = 0x1000, scoped, tag = 'scratch operand']
  %s0 = inlined_call_operand.vmem [shape: s32[8,1], index: 0, kind: input, shape index: {}]
  %s1 = inlined_call_operand.vmem [shape: f32[8,8,32], index: 1, kind: input, shape index: {}]
  %s2 = inlined_call_operand.vmem [shape: f32[32,128], index: 2, kind: input, shape index: {}]
  %s3 = inlined_call_operand.vmem [shape: f32[1,128], index: 3, kind: input, shape index: {}]
  %s4 = inlined_call_operand.vmem [shape: f32[8,128], index: 4, kind: output, shape index: {}]
  %s5 = sld [smem:[#allocation0]]
  $region34: #{mp_forward.1} parent=0
    _
  %s7 = ssub.s32 1, %s5
  %s8 = scalar_select 0, %s7, %s5
  // Predicated region
  $region2: #{mp_forward.1} parent=0 // pred_check
    _
  $region3: #{mp_forward.1} parent=0 // pred_check_branch
    %10 = sbr.rel (0) target = $region5
  $region4: #{mp_forward.1} parent=0 // pred_region
    _
  $region5: #{mp_forward.1} parent=0 // pred_fallthru
    _
  // Predicated region
  $region6: #{mp_forward.1} parent=0 // pred_check
    _
  $region7: #{mp_forward.1} parent=0 // pred_check_branch
    %12 = sbr.rel (0) target = $region9
  $region8: #{mp_forward.1} parent=0 // pred_region
    _
  $region9: #{mp_forward.1} parent=0 // pred_fallthru
    _
  // Predicated region
  $region10: #{mp_forward.1} parent=0 // pred_check
    _
  $region11: #{mp_forward.1} parent=0 // pred_check_branch
    %14 = sbr.rel (0) target = $region13
  $region12: #{mp_forward.1} parent=0 // pred_region
    _
  $region13: #{mp_forward.1} parent=0 // pred_fallthru
    _
  // Predicated region
  $region14: #{mp_forward.1} parent=0 // pred_check
    _
  $region15: #{mp_forward.1} parent=0 // pred_check_branch
    %16 = sbr.rel (0) target = $region17
  $region16: #{mp_forward.1} parent=0 // pred_region
    _
  $region17: #{mp_forward.1} parent=0 // pred_fallthru
    _
  %p17 = scmp.eq.s32.totalorder 0, 0
  // Predicated region
  $region18: #{mp_forward.1} parent=0 // pred_check
    %p18 = pneg %p17
  $region19: #{mp_forward.1} parent=0 // pred_check_branch
    %20 = sbr.rel (%p18) target = $region21
  $region20: #{mp_forward.1} parent=0 // pred_region
    %vm21 = vcmask 261120
    %22 = vst.msk [vmem:[#allocation2] sm:$0xff] %vm21, 0.0
  $region21: #{mp_forward.1} parent=0 // pred_fallthru
    _
  %v23 = vld [vmem:[%s1] sm:$0xff]
  %v24 = vld [vmem:[%s1 + $0x8] sm:$0xff]
  %v25 = vld [vmem:[%s1 + $0x10] sm:$0xff]
  %v26 = vld [vmem:[%s1 + $0x18] sm:$0xff]
  %v27 = vld [vmem:[%s1 + $0x20] sm:$0xff]
  %v28 = vld [vmem:[%s1 + $0x28] sm:$0xff]
  %v29 = vld [vmem:[%s1 + $0x30] sm:$0xff]
  %v30 = vld [vmem:[%s1 + $0x38] sm:$0xff]
  %v31 = vld [vmem:[%s0] sm:$0xff]
  %s32 = smul.u32 0, 8
  %v33 = vlaneseq
  %v34 = vshrl.u32 %v33, 7
  %v35 = vstv %s32
  %v36 = vadd.s32 %v35, %v34
  %v37 = vrot.slane %v31, 1
  %v38 = vrot.slane %v31, 2
  %v39 = vrot.slane %v31, 3
  %v40 = vrot.slane %v31, 4
  %v41 = vrot.slane %v31, 5
  %v42 = vrot.slane %v31, 6
  %v43 = vrot.slane %v31, 7
  %v44 = vperm.slane %v31, 0
  %v45 = vperm.slane %v37, 0
  %v46 = vperm.slane %v38, 0
  %v47 = vperm.slane %v39, 0
  %v48 = vperm.slane %v40, 0
  %v49 = vperm.slane %v41, 0
  %v50 = vperm.slane %v42, 0
  %v51 = vperm.slane %v43, 0
  %vm52 = vcmp.lt.s32.totalorder %v36, %v44
  %vm53 = vcmp.lt.s32.totalorder %v36, %v45
  %vm54 = vcmp.lt.s32.totalorder %v36, %v46
  %vm55 = vcmp.lt.s32.totalorder %v36, %v47
  %vm56 = vcmp.lt.s32.totalorder %v36, %v48
  %vm57 = vcmp.lt.s32.totalorder %v36, %v49
  %vm58 = vcmp.lt.s32.totalorder %v36, %v50
  %vm59 = vcmp.lt.s32.totalorder %v36, %v51
  %v60 = vld [vmem:[#allocation2] sm:$0xff]
  %v61 = vsel %vm52, 1, 0
  %v62 = vsel %vm53, 1, 0
  %v63 = vsel %vm54, 1, 0
  %v64 = vsel %vm55, 1, 0
  %v65 = vsel %vm56, 1, 0
  %v66 = vsel %vm57, 1, 0
  %v67 = vsel %vm58, 1, 0
  %v68 = vsel %vm59, 1, 0
  %69 = vset.pattern.permute.xlu0 0
  %70 = vperm.xlu0 %69, %v61
  %v71 = vpop.permute.xlu0 %70
  %72 = vset.pattern.permute.xlu0 0
  %73 = vperm.xlu0 %72, %v62
  %v74 = vpop.permute.xlu0 %73
  %75 = vset.pattern.permute.xlu0 0
  %76 = vperm.xlu0 %75, %v63
  %v77 = vpop.permute.xlu0 %76
  %78 = vset.pattern.permute.xlu0 0
  %79 = vperm.xlu0 %78, %v64
  %v80 = vpop.permute.xlu0 %79
  %81 = vset.pattern.permute.xlu0 0
  %82 = vperm.xlu0 %81, %v65
  %v83 = vpop.permute.xlu0 %82
  %84 = vset.pattern.permute.xlu0 0
  %85 = vperm.xlu0 %84, %v66
  %v86 = vpop.permute.xlu0 %85
  %87 = vset.pattern.permute.xlu0 0
  %88 = vperm.xlu0 %87, %v67
  %v89 = vpop.permute.xlu0 %88
  %90 = vset.pattern.permute.xlu0 0
  %91 = vperm.xlu0 %90, %v68
  %v92 = vpop.permute.xlu0 %91
  %vm93 = vcmp.eq.s32.totalorder %v71, 1
  %vm94 = vcmp.eq.s32.totalorder %v74, 1
  %vm95 = vcmp.eq.s32.totalorder %v77, 1
  %vm96 = vcmp.eq.s32.totalorder %v80, 1
  %vm97 = vcmp.eq.s32.totalorder %v83, 1
  %vm98 = vcmp.eq.s32.totalorder %v86, 1
  %vm99 = vcmp.eq.s32.totalorder %v89, 1
  %vm100 = vcmp.eq.s32.totalorder %v92, 1
  %v101 = vsel %vm93, %v23, 0.0
  %v102 = vsel %vm94, %v24, 0.0
  %v103 = vsel %vm95, %v25, 0.0
  %v104 = vsel %vm96, %v26, 0.0
  %v105 = vsel %vm97, %v27, 0.0
  %v106 = vsel %vm98, %v28, 0.0
  %v107 = vsel %vm99, %v29, 0.0
  %v108 = vsel %vm100, %v30, 0.0
  %vm109 = vcmask 261120
  %v110 = vsel %vm109, %v101, 0.0
  %v111 = vrot.slane %v110, 4
  %v112 = vadd.f32 %v110, %v111
  %v113 = vrot.slane %v112, 2
  %v114 = vadd.f32 %v112, %v113
  %v115 = vrot.slane %v114, 1
  %v116 = vadd.f32 %v114, %v115
  %v117 = vsel %vm109, %v102, 0.0
  %v118 = vrot.slane %v117, 4
  %v119 = vadd.f32 %v117, %v118
  %v120 = vrot.slane %v119, 2
  %v121 = vadd.f32 %v119, %v120
  %v122 = vrot.slane %v121, 1
  %v123 = vadd.f32 %v121, %v122
  %v124 = vsel %vm109, %v103, 0.0
  %v125 = vrot.slane %v124, 4
  %v126 = vadd.f32 %v124, %v125
  %v127 = vrot.slane %v126, 2
  %v128 = vadd.f32 %v126, %v127
  %v129 = vrot.slane %v128, 1
  %v130 = vadd.f32 %v128, %v129
  %v131 = vsel %vm109, %v104, 0.0
  %v132 = vrot.slane %v131, 4
  %v133 = vadd.f32 %v131, %v132
  %v134 = vrot.slane %v133, 2
  %v135 = vadd.f32 %v133, %v134
  %v136 = vrot.slane %v135, 1
  %v137 = vadd.f32 %v135, %v136
  %v138 = vsel %vm109, %v105, 0.0
  %v139 = vrot.slane %v138, 4
  %v140 = vadd.f32 %v138, %v139
  %v141 = vrot.slane %v140, 2
  %v142 = vadd.f32 %v140, %v141
  %v143 = vrot.slane %v142, 1
  %v144 = vadd.f32 %v142, %v143
  %v145 = vsel %vm109, %v106, 0.0
  %v146 = vrot.slane %v145, 4
  %v147 = vadd.f32 %v145, %v146
  %v148 = vrot.slane %v147, 2
  %v149 = vadd.f32 %v147, %v148
  %v150 = vrot.slane %v149, 1
  %v151 = vadd.f32 %v149, %v150
  %v152 = vsel %vm109, %v107, 0.0
  %v153 = vrot.slane %v152, 4
  %v154 = vadd.f32 %v152, %v153
  %v155 = vrot.slane %v154, 2
  %v156 = vadd.f32 %v154, %v155
  %v157 = vrot.slane %v156, 1
  %v158 = vadd.f32 %v156, %v157
  %v159 = vsel %vm109, %v108, 0.0
  %v160 = vrot.slane %v159, 4
  %v161 = vadd.f32 %v159, %v160
  %v162 = vrot.slane %v161, 2
  %v163 = vadd.f32 %v161, %v162
  %v164 = vrot.slane %v163, 1
  %v165 = vadd.f32 %v163, %v164
  %vm174 = vcmask 1041409
  %v175 = vsel %vm174, %v123, %v116
  %vm176 = vcmask 1042434
  %v177 = vsel %vm176, %v130, %v175
  %vm178 = vcmask 1043459
  %v179 = vsel %vm178, %v137, %v177
  %vm180 = vcmask 1044484
  %v181 = vsel %vm180, %v144, %v179
  %vm182 = vcmask 1045509
  %v183 = vsel %vm182, %v151, %v181
  %vm184 = vcmask 1046534
  %v185 = vsel %vm184, %v158, %v183
  %vm186 = vcmask 1047559
  %v187 = vsel %vm186, %v165, %v185
  %v189 = vadd.f32 %v60, %v187
  %190 = vst.msk [vmem:[#allocation2] sm:$0xff] %vm109, %v189
  // Predicated region
  $region22: #{mp_forward.1} parent=0 // pred_check
    %p191 = pneg %p17
  $region23: #{mp_forward.1} parent=0 // pred_check_branch
    %193 = sbr.rel (%p191) target = $region25
  $region24: #{mp_forward.1} parent=0 // pred_region
    %v194 = vld [vmem:[#allocation2] sm:$0xff]
    %v195 = vcvt.s32.f32 %v31
    %197 = vset.pattern.permute.xlu0 0
    %198 = vperm.xlu0 %197, %v195
    %v199 = vpop.permute.xlu0 %198
    %v201 = vrcp.pop %v199
    %v202 = vmul.f32 %v199, %v201
    %v203 = vsub.f32 1.0, %v202
    %v204 = vmul.f32 %v201, %v203
    %v205 = vadd.f32 %v201, %v204
    %vm206 = vweird.f32 %v199
    %vm207 = vweird.f32 %v201
    %vm208 = vmor %vm206, %vm207
    %v209 = vsel %vm208, %v201, %v205
    %v210 = vand.u32 2147483647, %v199
    %vm211 = vcmp.eq.f32.partialorder %v210, 8.507059e+37
    %v212 = vand.u32 %v199, 2147483648
    %v213 = vor.u32 1.1754944e-38, %v212
    %v214 = vsel %vm211, %v213, %v209
    %v215 = vmul.f32 %v194, %v214
    %v216 = vld [vmem:[%s2] sm:$0xff]
    %v217 = vld [vmem:[%s2 + $0x8] sm:$0xff]
    %v218 = vld [vmem:[%s2 + $0x10] sm:$0xff]
    %v219 = vld [vmem:[%s2 + $0x18] sm:$0xff]
    %v220 = vld [vmem:[%s3] sm:$0x1]
    %v222 = vperm.slane %v220, 0
    %v225 = vsel %vm109, %v215, 0
    %227 = vmatpush.msra.mxu0 0.0
    %228 = vmatpush.msra.mxu0 0.0
    %229 = vmatpush.msra.mxu0 0.0
    %230 = vmatpush.msra.mxu0 0.0
    %231 = vmatpush.msra.mxu0 0.0
    %232 = vmatpush.msra.mxu0 0.0
    %233 = vmatpush.msra.mxu0 0.0
    %234 = vmatpush.msra.mxu0 0.0
    %235 = vmatpush.msra.mxu0 0.0
    %236 = vmatpush.msra.mxu0 0.0
    %237 = vmatpush.msra.mxu0 0.0
    %238 = vmatpush.msra.mxu0 0.0
    %239 = vmatpush.msra.mxu0 %v219
    %240 = vmatpush.msra.mxu0 %v218
    %241 = vmatpush.msra.mxu0 %v217
    %242 = vmatpush.msra.mxu0 %v216
    %243 = vmatmul.f32.gmra.mxu0 %v225
    %v244 = vpop.f32.mrf.mxu0
    %v245 = vadd.f32 %v222, %v244
    %246 = vdwg.mxu0
    %247 = vst [vmem:[%s4] sm:$0xff] %v245
  $region25: #{mp_forward.1} parent=0 // pred_fallthru
    _
  // Predicated region
  $region26: #{mp_forward.1} parent=0 // pred_check
    _
  $region27: #{mp_forward.1} parent=0 // pred_check_branch
    %249 = sbr.rel (0) target = $region29
  $region28: #{mp_forward.1} parent=0 // pred_region
    _
  $region29: #{mp_forward.1} parent=0 // pred_fallthru
    _
  // Predicated region
  $region30: #{mp_forward.1} parent=0 // pred_check
    _
  $region31: #{mp_forward.1} parent=0 // pred_check_branch
    %251 = sbr.rel (0) target = $region33
  $region32: #{mp_forward.1} parent=0 // pred_region
    _
  $region33: #{mp_forward.1} parent=0 // pred_fallthru
    _

</llo_original>
